<compile_context>
chip_gen: v5e
topology: v5e:2x2
jax: 0.10.0
libtpu: 0.0.40
codegen_flags: <defaults>
</compile_context>

<pallas_src>
import functools

import jax
import jax.numpy as jnp
from jax.experimental import pallas as pl
from jax.experimental.pallas import tpu as pltpu


def _round_up(n, m):
    return ((n + m - 1) // m) * m


def _tcn_kernel(x_ref, w_ref, weff_ref, beff_ref, wr0_ref, br0_ref, wo_ref, bo_ref,
                o_ref, stage_ref, *, num_layers, kernel_size, bb, cmax, c_in, T,
                has_res0):
    """One packed batch block (bb batch elements) per grid step.

    x_ref    : (bb, c_in, T)   VMEM  raw input block (no host padding)
    w_ref    : (L*K,)          SMEM  shared depthwise taps (flat, scalar reads)
    weff_ref : (L, P, P)       VMEM  block-diagonal pointwise conv fused w/ eval BN
    beff_ref : (L, P, 1)       VMEM  fused bias (tiled per packed batch element)
    wr0_ref  : (P, P)          VMEM  block-diag layer-0 residual 1x1 conv (if any)
    br0_ref  : (P, 1)          VMEM
    wo_ref   : (bb, P)         VMEM  out_conv packed: row j reduces rows [j*cmax, j*cmax+H)
    bo_ref   : (1,)            SMEM  out_conv bias
    o_ref    : (1, bb, tp)     VMEM  lane-dense output block (tp % 128 == 0)
    stage_ref: (P, tp)         VMEM  scratch for packing x into the padded layout
    """
    P, tp = stage_ref.shape

    # Pack the (bb, c_in, T) input block into the zero-padded (P, tp) layout:
    # batch j occupies rows [j*cmax, j*cmax + c_in), lanes [0, T); rest is zero.
    stage_ref[...] = jnp.zeros_like(stage_ref)
    for j in range(bb):
        stage_ref[j * cmax:j * cmax + c_in, :T] = x_ref[j]
    x0 = stage_ref[...]                              # (P, tp) f32
    cur = x0

    # Hoisted lane iota (JAX does not CSE broadcast_in_dim inside the loop).
    lane = jax.lax.broadcasted_iota(jnp.int32, (P, tp), 1)

    # L and K are tiny & static -> Python unroll.
    for l in range(num_layers):
        d = 2 ** l
        conv = w_ref[l * kernel_size + kernel_size - 1] * cur        # zero-shift tap
        for k in range(kernel_size - 1):
            shift = (kernel_size - 1 - k) * d
            if shift >= tp:
                continue                                             # fully out of window
            shifted = pltpu.roll(cur, shift, axis=1)                 # out[t] = cur[t-shift]
            shifted = jnp.where(lane >= shift, shifted, 0.0)         # zero wrapped lanes
            conv = conv + w_ref[l * kernel_size + k] * shifted

        # 1x1 conv + eval BatchNorm fused into one block-diagonal affine, then ReLU.
        z = jnp.dot(weff_ref[l], conv, preferred_element_type=jnp.float32) + beff_ref[l]
        act = jnp.maximum(z, 0.0)

        # Residual: 1x1 conv on layer 0 only when C_in != H; identity otherwise.
        if l == 0 and has_res0:
            res = jnp.dot(wr0_ref[...], x0,
                          preferred_element_type=jnp.float32) + br0_ref[...]
        else:
            res = cur
        cur = jnp.maximum(act + res, 0.0)

    # out_conv: per-batch-element channel reduction as a (bb, P) x (P, tp) matmul.
    y = jnp.dot(wo_ref[...], cur, preferred_element_type=jnp.float32) + bo_ref[0]
    o_ref[0] = y.astype(o_ref.dtype)


def channelwise_tcn_forward(x, p, *, num_layers, kernel_size):
    """x: (B, C_in, T) -> (B, 1, T), matching ChannelWiseTCN.forward (eval mode)."""
    B, c_in, T = x.shape
    H = p["pw_w"][0].shape[0]
    eps = 1e-5

    cmax = _round_up(max(c_in, H), 8)            # sublane-aligned channel count
    tp = _round_up(T, 128)                       # lane-aligned time axis
    bb = max(1, min(128 // max(cmax, 1), B))     # batch elements packed per grid step
    Bp = _round_up(B, bb)
    grid = Bp // bb
    P = bb * cmax                                # packed sublane extent
    has_res0 = p.get("res0_w") is not None

    eye_bb = jnp.eye(bb, dtype=jnp.float32)

    # ---- host-side parameter fusion (tiny, done once) ----
    # shared depthwise taps, flattened to 1-D for SMEM.
    w_shared = jnp.concatenate([jnp.asarray(w, jnp.float32).reshape(-1)
                                for w in p["shared_w"]])                     # (L*K,)

    # pointwise conv + eval BatchNorm fused; zero-padded to cmax and block-diagonalized.
    weff_l, beff_l = [], []
    for l in range(num_layers):
        scale = p["gamma"][l] / jnp.sqrt(p["rvar"][l] + eps)                 # (H,)
        w_l = (scale[:, None] * p["pw_w"][l]).astype(jnp.float32)            # (H, c_l)
        b_l = (scale * (p["pw_b"][l] - p["rmean"][l]) + p["beta"][l]).astype(jnp.float32)
        w_pad = jnp.zeros((cmax, cmax), jnp.float32).at[:H, :w_l.shape[1]].set(w_l)
        b_pad = jnp.zeros((cmax,), jnp.float32).at[:H].set(b_l)
        weff_l.append(jnp.kron(eye_bb, w_pad))                               # (P, P)
        beff_l.append(jnp.tile(b_pad, bb))                                   # (P,)
    weff = jnp.stack(weff_l)                                                 # (L, P, P)
    beff = jnp.stack(beff_l)[:, :, None]                                     # (L, P, 1)

    # layer-0 residual 1x1 conv (only materialized when C_in != H; skipped in-kernel otherwise)
    wr0_pad = jnp.zeros((cmax, cmax), jnp.float32)
    br0_pad = jnp.zeros((cmax,), jnp.float32)
    if has_res0:
        wr0_pad = wr0_pad.at[:H, :c_in].set(p["res0_w"].astype(jnp.float32))
        br0_pad = br0_pad.at[:H].set(p["res0_b"].astype(jnp.float32))
    wr0 = jnp.kron(eye_bb, wr0_pad)                                          # (P, P)
    br0 = jnp.tile(br0_pad, bb)[:, None]                                     # (P, 1)

    # out_conv packed per batch element.
    wo_row = jnp.zeros((1, cmax), jnp.float32).at[0, :H].set(
        p["out_w"][0].astype(jnp.float32))
    wo = jnp.kron(eye_bb, wo_row)                                            # (bb, P)
    bo = p["out_b"].reshape(1).astype(jnp.float32)

    # Only the batch axis is (possibly) padded on the host; channel/time padding is in-kernel.
    x_f32 = x.astype(jnp.float32)
    if Bp > B:
        x_f32 = jnp.concatenate(
            [x_f32, jnp.zeros((Bp - B, c_in, T), jnp.float32)], axis=0)

    kernel = functools.partial(
        _tcn_kernel, num_layers=num_layers, kernel_size=kernel_size,
        bb=bb, cmax=cmax, c_in=c_in, T=T, has_res0=has_res0)

    smem = pl.BlockSpec(memory_space=pltpu.MemorySpace.SMEM)

    # VMEM budget: double-buffered x / weight / output blocks + staging scratch + live-vreg headroom.
    vmem_bytes = 4 * (2 * bb * c_in * T
                      + 2 * (num_layers * P * (P + 1) + P * (P + 1) + bb * P)
                      + 2 * bb * tp
                      + P * tp
                      + 8 * P * tp)
    vmem_limit = int(min(max(2 * vmem_bytes, 4 * 1024 * 1024), 48 * 1024 * 1024))

    # TODO(synk): for long T add a time-tile grid axis; the halo must be the cumulative
    # receptive field (K-1)*(2**num_layers - 1) of ALL layers, with earlier-layer halo
    # activations recomputed (or carried) per time tile.
    # TODO(synk): on v6e/v7x, ship x/weights as bf16 over HBM (upcast in VMEM) once the
    # accuracy budget allows; kept f32 here so the built-in correctness check stays tight.
    y = pl.pallas_call(
        kernel,
        out_shape=jax.ShapeDtypeStruct((grid, bb, tp), jnp.float32),
        grid=(grid,),
        in_specs=[
            pl.BlockSpec((bb, c_in, T), lambda b: (b, 0, 0)),               # x (batch tiled)
            smem,                                                           # shared taps (L*K,)
            pl.BlockSpec((num_layers, P, P), lambda b: (0, 0, 0)),          # weff
            pl.BlockSpec((num_layers, P, 1), lambda b: (0, 0, 0)),          # beff
            pl.BlockSpec((P, P), lambda b: (0, 0)),                         # wr0
            pl.BlockSpec((P, 1), lambda b: (0, 0)),                         # br0
            pl.BlockSpec((bb, P), lambda b: (0, 0)),                        # wo
            smem,                                                           # bo (1,)
        ],
        out_specs=pl.BlockSpec((1, bb, tp), lambda b: (b, 0, 0)),
        scratch_shapes=[pltpu.VMEM((P, tp), jnp.float32)],
        compiler_params=pltpu.CompilerParams(
            dimension_semantics=("parallel",),          # packed-batch grid, megacore-shardable
            vmem_limit_bytes=vmem_limit),
    )(x_f32, w_shared, weff, beff, wr0, br0, wo, bo)

    return y.reshape(grid * bb, tp)[:B, :T][:, None, :]


def channelwise_tcn_reference(x, p, *, num_layers, kernel_size):
    """Pure-JAX reference of the same forward pass (unfused params) for verification."""
    eps = 1e-5
    B, c_in, T = x.shape
    cur = x.astype(jnp.float32)
    for l in range(num_layers):
        d = 2 ** l
        w = p["shared_w"][l]
        padded = jnp.pad(cur, ((0, 0), (0, 0), ((kernel_size - 1) * d, 0)))
        conv = jnp.zeros_like(cur)
        for k in range(kernel_size):
            conv = conv + w[k] * padded[:, :, k * d:k * d + T]
        pw = jnp.einsum("oc,bct->bot", p["pw_w"][l], conv) + p["pw_b"][l][None, :, None]
        scale = p["gamma"][l] / jnp.sqrt(p["rvar"][l] + eps)
        bn = (pw - p["rmean"][l][None, :, None]) * scale[None, :, None] \
             + p["beta"][l][None, :, None]
        act = jnp.maximum(bn, 0.0)
        if l == 0 and p.get("res0_w") is not None:
            res = jnp.einsum("oc,bct->bot", p["res0_w"], cur) + p["res0_b"][None, :, None]
        else:
            res = cur
        cur = jnp.maximum(act + res, 0.0)
    return jnp.einsum("oc,bct->bot", p["out_w"], cur) + p["out_b"][None, :, None]


if __name__ == "__main__":
    # ChannelWiseTCN(in_channels=4, hidden_channels=8, num_layers=3, kernel_size=3),
    # eval mode, applied to x of shape (batch=2, channels=4, seq_len=16).
    B, C_IN, H, T = 2, 4, 8, 16
    L, K = 3, 3

    keys = iter(jax.random.split(jax.random.PRNGKey(0), 32))

    x = jax.random.normal(next(keys), (B, C_IN, T), dtype=jnp.float32)

    shared_w, pw_w, pw_b = [], [], []
    gamma, beta, rmean, rvar = [], [], [], []
    for l in range(L):
        c_l = C_IN if l == 0 else H
        shared_w.append(0.5 * jax.random.normal(next(keys), (K,), jnp.float32))
        pw_w.append(jax.random.normal(next(keys), (H, c_l), jnp.float32) / jnp.sqrt(c_l))
        pw_b.append(0.1 * jax.random.normal(next(keys), (H,), jnp.float32))
        gamma.append(jax.random.uniform(next(keys), (H,), jnp.float32, 0.5, 1.5))
        beta.append(0.1 * jax.random.normal(next(keys), (H,), jnp.float32))
        rmean.append(0.1 * jax.random.normal(next(keys), (H,), jnp.float32))
        rvar.append(jax.random.uniform(next(keys), (H,), jnp.float32, 0.5, 1.5))

    res0_w = (jax.random.normal(next(keys), (H, C_IN), jnp.float32) / jnp.sqrt(C_IN)
              if C_IN != H else None)
    res0_b = 0.1 * jax.random.normal(next(keys), (H,), jnp.float32) if C_IN != H else None
    out_w = jax.random.normal(next(keys), (1, H), jnp.float32) / jnp.sqrt(H)
    out_b = 0.1 * jax.random.normal(next(keys), (1,), jnp.float32)

    params = dict(shared_w=shared_w, pw_w=pw_w, pw_b=pw_b, gamma=gamma, beta=beta,
                  rmean=rmean, rvar=rvar, res0_w=res0_w, res0_b=res0_b,
                  out_w=out_w, out_b=out_b)

    y = jax.block_until_ready(
        channelwise_tcn_forward(x, params, num_layers=L, kernel_size=K))
    y_ref = channelwise_tcn_reference(x, params, num_layers=L, kernel_size=K)

    assert y.shape == (B, 1, T), y.shape
    max_err = float(jnp.max(jnp.abs(y - y_ref)))
    assert jnp.allclose(y, y_ref, atol=2e-3, rtol=2e-3), max_err
    print("KERNEL_OK")
</pallas_src>

<mosaic_0001>
module attributes {stable_mosaic.version = 11 : i64} {
  func.func @_tcn_kernel(%arg0: i32, %arg1: memref<2x4x16xf32, #tpu.memory_space<vmem>>, %arg2: memref<9xf32, #tpu.memory_space<smem>>, %arg3: memref<3x16x16xf32, #tpu.memory_space<vmem>>, %arg4: memref<3x16x1xf32, #tpu.memory_space<vmem>>, %arg5: memref<16x16xf32, #tpu.memory_space<vmem>>, %arg6: memref<16x1xf32, #tpu.memory_space<vmem>>, %arg7: memref<2x16xf32, #tpu.memory_space<vmem>>, %arg8: memref<1xf32, #tpu.memory_space<smem>>, %arg9: memref<1x2x128xf32, #tpu.memory_space<vmem>>, %arg10: memref<16x128xf32, #tpu.memory_space<vmem>>) attributes {dimension_semantics = [#tpu.dimension_semantics<parallel>], iteration_bounds = array<i64: 1>, scalar_prefetch = 0 : i64, scratch_operands = 1 : i64, tpu.core_type = #tpu.core_type<tc>, window_params = [{transform_indices = @transform_0, window_bounds = array<i64: 2, 4, 16>}, {transform_indices = @transform_1, window_bounds = array<i64: 9>}, {pipeline_mode = #tpu.pipeline_mode<synchronous>, transform_indices = @transform_2, window_bounds = array<i64: 3, 16, 16>}, {pipeline_mode = #tpu.pipeline_mode<synchronous>, transform_indices = @transform_3, window_bounds = array<i64: 3, 16, 1>}, {pipeline_mode = #tpu.pipeline_mode<synchronous>, transform_indices = @transform_4, window_bounds = array<i64: 16, 16>}, {pipeline_mode = #tpu.pipeline_mode<synchronous>, transform_indices = @transform_5, window_bounds = array<i64: 16, 1>}, {pipeline_mode = #tpu.pipeline_mode<synchronous>, transform_indices = @transform_6, window_bounds = array<i64: 2, 16>}, {transform_indices = @transform_7, window_bounds = array<i64: 1>}, {transform_indices = @transform_8, window_bounds = array<i64: 1, 2, 128>}]} {
    %cst = arith.constant 0.000000e+00 : f32
    %0 = vector.broadcast %cst : f32 to vector<16x128xf32>
    %c0 = arith.constant 0 : index
    %c0_0 = arith.constant 0 : index
    %1 = vector.load %arg10[%c0, %c0_0] : memref<16x128xf32, #tpu.memory_space<vmem>>, vector<16x128xf32>
    tpu.vector_store %arg10[%c0, %c0_0], %0 {strides = array<i32>} : memref<16x128xf32, #tpu.memory_space<vmem>>, vector<16x128xf32>,
    %c0_1 = arith.constant 0 : index
    %c0_2 = arith.constant 0 : index
    %c0_3 = arith.constant 0 : index
    %2 = vector.load %arg1[%c0_1, %c0_2, %c0_3] : memref<2x4x16xf32, #tpu.memory_space<vmem>>, vector<1x4x16xf32>
    %3 = vector.shape_cast %2 : vector<1x4x16xf32> to vector<4x16xf32>
    %c0_4 = arith.constant 0 : index
    %c0_5 = arith.constant 0 : index
    %4 = vector.load %arg10[%c0_4, %c0_5] : memref<16x128xf32, #tpu.memory_space<vmem>>, vector<4x16xf32>
    tpu.vector_store %arg10[%c0_4, %c0_5], %3 {strides = array<i32>} : memref<16x128xf32, #tpu.memory_space<vmem>>, vector<4x16xf32>,
    %c1 = arith.constant 1 : index
    %c0_6 = arith.constant 0 : index
    %c0_7 = arith.constant 0 : index
    %5 = vector.load %arg1[%c1, %c0_6, %c0_7] : memref<2x4x16xf32, #tpu.memory_space<vmem>>, vector<1x4x16xf32>
    %6 = vector.shape_cast %5 : vector<1x4x16xf32> to vector<4x16xf32>
    %c8 = arith.constant 8 : index
    %c0_8 = arith.constant 0 : index
    %7 = vector.load %arg10[%c8, %c0_8] : memref<16x128xf32, #tpu.memory_space<vmem>>, vector<4x16xf32>
    tpu.vector_store %arg10[%c8, %c0_8], %6 {strides = array<i32>} : memref<16x128xf32, #tpu.memory_space<vmem>>, vector<4x16xf32>,
    %c0_9 = arith.constant 0 : index
    %c0_10 = arith.constant 0 : index
    %8 = vector.load %arg10[%c0_9, %c0_10] : memref<16x128xf32, #tpu.memory_space<vmem>>, vector<16x128xf32>
    %9 = tpu.iota {dimensions = array<i32: 1>} : vector<16x128xi32>
    %c2 = arith.constant 2 : index
    %10 = memref.load %arg2[%c2] : memref<9xf32, #tpu.memory_space<smem>>
    %11 = vector.broadcast %10 : f32 to vector<16x128xf32>
    %12 = arith.mulf %11, %8 : vector<16x128xf32>
    %c2_i32 = arith.constant 2 : i32
    %13 = tpu.dynamic_rotate %8 by %c2_i32 dim 1 : vector<16x128xf32>, i32 -> vector<16x128xf32>
    %c2_i32_11 = arith.constant 2 : i32
    %14 = vector.broadcast %c2_i32_11 : i32 to vector<16x128xi32>
    %15 = arith.cmpi sge, %9, %14 : vector<16x128xi32>
    %cst_12 = arith.constant 0.000000e+00 : f32
    %16 = vector.broadcast %cst_12 : f32 to vector<16x128xf32>
    %17 = arith.select %15, %13, %16 : vector<16x128xi1>, vector<16x128xf32>
    %c0_13 = arith.constant 0 : index
    %18 = memref.load %arg2[%c0_13] : memref<9xf32, #tpu.memory_space<smem>>
    %19 = vector.broadcast %18 : f32 to vector<16x128xf32>
    %20 = arith.mulf %19, %17 : vector<16x128xf32>
    %21 = arith.addf %12, %20 : vector<16x128xf32>
    %c1_i32 = arith.constant 1 : i32
    %22 = tpu.dynamic_rotate %8 by %c1_i32 dim 1 : vector<16x128xf32>, i32 -> vector<16x128xf32>
    %c1_i32_14 = arith.constant 1 : i32
    %23 = vector.broadcast %c1_i32_14 : i32 to vector<16x128xi32>
    %24 = arith.cmpi sge, %9, %23 : vector<16x128xi32>
    %cst_15 = arith.constant 0.000000e+00 : f32
    %25 = vector.broadcast %cst_15 : f32 to vector<16x128xf32>
    %26 = arith.select %24, %22, %25 : vector<16x128xi1>, vector<16x128xf32>
    %c1_16 = arith.constant 1 : index
    %27 = memref.load %arg2[%c1_16] : memref<9xf32, #tpu.memory_space<smem>>
    %28 = vector.broadcast %27 : f32 to vector<16x128xf32>
    %29 = arith.mulf %28, %26 : vector<16x128xf32>
    %30 = arith.addf %21, %29 : vector<16x128xf32>
    %c0_17 = arith.constant 0 : index
    %c0_18 = arith.constant 0 : index
    %c0_19 = arith.constant 0 : index
    %31 = vector.load %arg3[%c0_17, %c0_18, %c0_19] : memref<3x16x16xf32, #tpu.memory_space<vmem>>, vector<1x16x16xf32>
    %32 = vector.shape_cast %31 : vector<1x16x16xf32> to vector<16x16xf32>
    %cst_20 = arith.constant dense<0.000000e+00> : vector<16x128xf32>
    %33 = tpu.matmul %32, %30, %cst_20 {dimension_numbers = #tpu.dot_dimension_numbers<[1], [0], [0], [1], [0, 0, 1, 1], [], []>} : vector<16x16xf32>, vector<16x128xf32>, vector<16x128xf32> -> vector<16x128xf32>
    %c0_21 = arith.constant 0 : index
    %c0_22 = arith.constant 0 : index
    %c0_23 = arith.constant 0 : index
    %34 = vector.load %arg4[%c0_21, %c0_22, %c0_23] : memref<3x16x1xf32, #tpu.memory_space<vmem>>, vector<1x16x1xf32>
    %35 = vector.shape_cast %34 : vector<1x16x1xf32> to vector<16x1xf32>
    %36 = vector.broadcast %35 : vector<16x1xf32> to vector<16x128xf32>
    %37 = arith.addf %33, %36 : vector<16x128xf32>
    %cst_24 = arith.constant 0.000000e+00 : f32
    %38 = vector.broadcast %cst_24 : f32 to vector<16x128xf32>
    %39 = arith.maximumf %37, %38 : vector<16x128xf32>
    %c0_25 = arith.constant 0 : index
    %c0_26 = arith.constant 0 : index
    %40 = vector.load %arg5[%c0_25, %c0_26] : memref<16x16xf32, #tpu.memory_space<vmem>>, vector<16x16xf32>
    %cst_27 = arith.constant dense<0.000000e+00> : vector<16x128xf32>
    %41 = tpu.matmul %40, %8, %cst_27 {dimension_numbers = #tpu.dot_dimension_numbers<[1], [0], [0], [1], [0, 0, 1, 1], [], []>} : vector<16x16xf32>, vector<16x128xf32>, vector<16x128xf32> -> vector<16x128xf32>
    %c0_28 = arith.constant 0 : index
    %c0_29 = arith.constant 0 : index
    %42 = vector.load %arg6[%c0_28, %c0_29] : memref<16x1xf32, #tpu.memory_space<vmem>>, vector<16x1xf32>
    %43 = vector.broadcast %42 : vector<16x1xf32> to vector<16x128xf32>
    %44 = arith.addf %41, %43 : vector<16x128xf32>
    %45 = arith.addf %39, %44 : vector<16x128xf32>
    %cst_30 = arith.constant 0.000000e+00 : f32
    %46 = vector.broadcast %cst_30 : f32 to vector<16x128xf32>
    %47 = arith.maximumf %45, %46 : vector<16x128xf32>
    %c5 = arith.constant 5 : index
    %48 = memref.load %arg2[%c5] : memref<9xf32, #tpu.memory_space<smem>>
    %49 = vector.broadcast %48 : f32 to vector<16x128xf32>
    %50 = arith.mulf %49, %47 : vector<16x128xf32>
    %c4_i32 = arith.constant 4 : i32
    %51 = tpu.dynamic_rotate %47 by %c4_i32 dim 1 : vector<16x128xf32>, i32 -> vector<16x128xf32>
    %c4_i32_31 = arith.constant 4 : i32
    %52 = vector.broadcast %c4_i32_31 : i32 to vector<16x128xi32>
    %53 = arith.cmpi sge, %9, %52 : vector<16x128xi32>
    %cst_32 = arith.constant 0.000000e+00 : f32
    %54 = vector.broadcast %cst_32 : f32 to vector<16x128xf32>
    %55 = arith.select %53, %51, %54 : vector<16x128xi1>, vector<16x128xf32>
    %c3 = arith.constant 3 : index
    %56 = memref.load %arg2[%c3] : memref<9xf32, #tpu.memory_space<smem>>
    %57 = vector.broadcast %56 : f32 to vector<16x128xf32>
    %58 = arith.mulf %57, %55 : vector<16x128xf32>
    %59 = arith.addf %50, %58 : vector<16x128xf32>
    %c2_i32_33 = arith.constant 2 : i32
    %60 = tpu.dynamic_rotate %47 by %c2_i32_33 dim 1 : vector<16x128xf32>, i32 -> vector<16x128xf32>
    %c2_i32_34 = arith.constant 2 : i32
    %61 = vector.broadcast %c2_i32_34 : i32 to vector<16x128xi32>
    %62 = arith.cmpi sge, %9, %61 : vector<16x128xi32>
    %cst_35 = arith.constant 0.000000e+00 : f32
    %63 = vector.broadcast %cst_35 : f32 to vector<16x128xf32>
    %64 = arith.select %62, %60, %63 : vector<16x128xi1>, vector<16x128xf32>
    %c4 = arith.constant 4 : index
    %65 = memref.load %arg2[%c4] : memref<9xf32, #tpu.memory_space<smem>>
    %66 = vector.broadcast %65 : f32 to vector<16x128xf32>
    %67 = arith.mulf %66, %64 : vector<16x128xf32>
    %68 = arith.addf %59, %67 : vector<16x128xf32>
    %c1_36 = arith.constant 1 : index
    %c0_37 = arith.constant 0 : index
    %c0_38 = arith.constant 0 : index
    %69 = vector.load %arg3[%c1_36, %c0_37, %c0_38] : memref<3x16x16xf32, #tpu.memory_space<vmem>>, vector<1x16x16xf32>
    %70 = vector.shape_cast %69 : vector<1x16x16xf32> to vector<16x16xf32>
    %cst_39 = arith.constant dense<0.000000e+00> : vector<16x128xf32>
    %71 = tpu.matmul %70, %68, %cst_39 {dimension_numbers = #tpu.dot_dimension_numbers<[1], [0], [0], [1], [0, 0, 1, 1], [], []>} : vector<16x16xf32>, vector<16x128xf32>, vector<16x128xf32> -> vector<16x128xf32>
    %c1_40 = arith.constant 1 : index
    %c0_41 = arith.constant 0 : index
    %c0_42 = arith.constant 0 : index
    %72 = vector.load %arg4[%c1_40, %c0_41, %c0_42] : memref<3x16x1xf32, #tpu.memory_space<vmem>>, vector<1x16x1xf32>
    %73 = vector.shape_cast %72 : vector<1x16x1xf32> to vector<16x1xf32>
    %74 = vector.broadcast %73 : vector<16x1xf32> to vector<16x128xf32>
    %75 = arith.addf %71, %74 : vector<16x128xf32>
    %cst_43 = arith.constant 0.000000e+00 : f32
    %76 = vector.broadcast %cst_43 : f32 to vector<16x128xf32>
    %77 = arith.maximumf %75, %76 : vector<16x128xf32>
    %78 = arith.addf %77, %47 : vector<16x128xf32>
    %cst_44 = arith.constant 0.000000e+00 : f32
    %79 = vector.broadcast %cst_44 : f32 to vector<16x128xf32>
    %80 = arith.maximumf %78, %79 : vector<16x128xf32>
    %c8_45 = arith.constant 8 : index
    %81 = memref.load %arg2[%c8_45] : memref<9xf32, #tpu.memory_space<smem>>
    %82 = vector.broadcast %81 : f32 to vector<16x128xf32>
    %83 = arith.mulf %82, %80 : vector<16x128xf32>
    %c8_i32 = arith.constant 8 : i32
    %84 = tpu.dynamic_rotate %80 by %c8_i32 dim 1 : vector<16x128xf32>, i32 -> vector<16x128xf32>
    %c8_i32_46 = arith.constant 8 : i32
    %85 = vector.broadcast %c8_i32_46 : i32 to vector<16x128xi32>
    %86 = arith.cmpi sge, %9, %85 : vector<16x128xi32>
    %cst_47 = arith.constant 0.000000e+00 : f32
    %87 = vector.broadcast %cst_47 : f32 to vector<16x128xf32>
    %88 = arith.select %86, %84, %87 : vector<16x128xi1>, vector<16x128xf32>
    %c6 = arith.constant 6 : index
    %89 = memref.load %arg2[%c6] : memref<9xf32, #tpu.memory_space<smem>>
    %90 = vector.broadcast %89 : f32 to vector<16x128xf32>
    %91 = arith.mulf %90, %88 : vector<16x128xf32>
    %92 = arith.addf %83, %91 : vector<16x128xf32>
    %c4_i32_48 = arith.constant 4 : i32
    %93 = tpu.dynamic_rotate %80 by %c4_i32_48 dim 1 : vector<16x128xf32>, i32 -> vector<16x128xf32>
    %c4_i32_49 = arith.constant 4 : i32
    %94 = vector.broadcast %c4_i32_49 : i32 to vector<16x128xi32>
    %95 = arith.cmpi sge, %9, %94 : vector<16x128xi32>
    %cst_50 = arith.constant 0.000000e+00 : f32
    %96 = vector.broadcast %cst_50 : f32 to vector<16x128xf32>
    %97 = arith.select %95, %93, %96 : vector<16x128xi1>, vector<16x128xf32>
    %c7 = arith.constant 7 : index
    %98 = memref.load %arg2[%c7] : memref<9xf32, #tpu.memory_space<smem>>
    %99 = vector.broadcast %98 : f32 to vector<16x128xf32>
    %100 = arith.mulf %99, %97 : vector<16x128xf32>
    %101 = arith.addf %92, %100 : vector<16x128xf32>
    %c2_51 = arith.constant 2 : index
    %c0_52 = arith.constant 0 : index
    %c0_53 = arith.constant 0 : index
    %102 = vector.load %arg3[%c2_51, %c0_52, %c0_53] : memref<3x16x16xf32, #tpu.memory_space<vmem>>, vector<1x16x16xf32>
    %103 = vector.shape_cast %102 : vector<1x16x16xf32> to vector<16x16xf32>
    %cst_54 = arith.constant dense<0.000000e+00> : vector<16x128xf32>
    %104 = tpu.matmul %103, %101, %cst_54 {dimension_numbers = #tpu.dot_dimension_numbers<[1], [0], [0], [1], [0, 0, 1, 1], [], []>} : vector<16x16xf32>, vector<16x128xf32>, vector<16x128xf32> -> vector<16x128xf32>
    %c2_55 = arith.constant 2 : index
    %c0_56 = arith.constant 0 : index
    %c0_57 = arith.constant 0 : index
    %105 = vector.load %arg4[%c2_55, %c0_56, %c0_57] : memref<3x16x1xf32, #tpu.memory_space<vmem>>, vector<1x16x1xf32>
    %106 = vector.shape_cast %105 : vector<1x16x1xf32> to vector<16x1xf32>
    %107 = vector.broadcast %106 : vector<16x1xf32> to vector<16x128xf32>
    %108 = arith.addf %104, %107 : vector<16x128xf32>
    %cst_58 = arith.constant 0.000000e+00 : f32
    %109 = vector.broadcast %cst_58 : f32 to vector<16x128xf32>
    %110 = arith.maximumf %108, %109 : vector<16x128xf32>
    %111 = arith.addf %110, %80 : vector<16x128xf32>
    %cst_59 = arith.constant 0.000000e+00 : f32
    %112 = vector.broadcast %cst_59 : f32 to vector<16x128xf32>
    %113 = arith.maximumf %111, %112 : vector<16x128xf32>
    %c0_60 = arith.constant 0 : index
    %c0_61 = arith.constant 0 : index
    %114 = vector.load %arg7[%c0_60, %c0_61] : memref<2x16xf32, #tpu.memory_space<vmem>>, vector<2x16xf32>
    %cst_62 = arith.constant dense<0.000000e+00> : vector<2x128xf32>
    %115 = tpu.matmul %114, %113, %cst_62 {dimension_numbers = #tpu.dot_dimension_numbers<[1], [0], [0], [1], [0, 0, 1, 1], [], []>} : vector<2x16xf32>, vector<16x128xf32>, vector<2x128xf32> -> vector<2x128xf32>
    %c0_63 = arith.constant 0 : index
    %116 = memref.load %arg8[%c0_63] : memref<1xf32, #tpu.memory_space<smem>>
    %117 = vector.broadcast %116 : f32 to vector<2x128xf32>
    %118 = arith.addf %115, %117 : vector<2x128xf32>
    %c0_64 = arith.constant 0 : index
    %c0_65 = arith.constant 0 : index
    %c0_66 = arith.constant 0 : index
    %119 = vector.load %arg9[%c0_64, %c0_65, %c0_66] : memref<1x2x128xf32, #tpu.memory_space<vmem>>, vector<1x2x128xf32>
    %120 = vector.shape_cast %119 : vector<1x2x128xf32> to vector<2x128xf32>
    %121 = vector.shape_cast %118 : vector<2x128xf32> to vector<1x2x128xf32>
    tpu.vector_store %arg9[%c0_64, %c0_65, %c0_66], %121 {strides = array<i32>} : memref<1x2x128xf32, #tpu.memory_space<vmem>>, vector<1x2x128xf32>,
    return
  }
  func.func @transform_0(%arg0: i32) -> (i32, i32, i32) {
    %c0_i32 = arith.constant 0 : i32
    %c0_i32_0 = arith.constant 0 : i32
    %c0_i32_1 = arith.constant 0 : i32
    return %arg0, %c0_i32, %c0_i32_0 : i32, i32, i32
  }
  func.func @transform_1(%arg0: i32) -> i32 {
    %c0_i32 = arith.constant 0 : i32
    %c0_i32_0 = arith.constant 0 : i32
    return %c0_i32 : i32
  }
  func.func @transform_2(%arg0: i32) -> (i32, i32, i32) {
    %c0_i32 = arith.constant 0 : i32
    %c0_i32_0 = arith.constant 0 : i32
    %c0_i32_1 = arith.constant 0 : i32
    %c0_i32_2 = arith.constant 0 : i32
    return %c0_i32, %c0_i32_0, %c0_i32_1 : i32, i32, i32
  }
  func.func @transform_3(%arg0: i32) -> (i32, i32, i32) {
    %c0_i32 = arith.constant 0 : i32
    %c0_i32_0 = arith.constant 0 : i32
    %c0_i32_1 = arith.constant 0 : i32
    %c0_i32_2 = arith.constant 0 : i32
    return %c0_i32, %c0_i32_0, %c0_i32_1 : i32, i32, i32
  }
  func.func @transform_4(%arg0: i32) -> (i32, i32) {
    %c0_i32 = arith.constant 0 : i32
    %c0_i32_0 = arith.constant 0 : i32
    %c0_i32_1 = arith.constant 0 : i32
    return %c0_i32, %c0_i32_0 : i32, i32
  }
  func.func @transform_5(%arg0: i32) -> (i32, i32) {
    %c0_i32 = arith.constant 0 : i32
    %c0_i32_0 = arith.constant 0 : i32
    %c0_i32_1 = arith.constant 0 : i32
    return %c0_i32, %c0_i32_0 : i32, i32
  }
  func.func @transform_6(%arg0: i32) -> (i32, i32) {
    %c0_i32 = arith.constant 0 : i32
    %c0_i32_0 = arith.constant 0 : i32
    %c0_i32_1 = arith.constant 0 : i32
    return %c0_i32, %c0_i32_0 : i32, i32
  }
  func.func @transform_7(%arg0: i32) -> i32 {
    %c0_i32 = arith.constant 0 : i32
    %c0_i32_0 = arith.constant 0 : i32
    return %c0_i32 : i32
  }
  func.func @transform_8(%arg0: i32) -> (i32, i32, i32) {
    %c0_i32 = arith.constant 0 : i32
    %c0_i32_0 = arith.constant 0 : i32
    %c0_i32_1 = arith.constant 0 : i32
    return %arg0, %c0_i32, %c0_i32_0 : i32, i32, i32
  }
}

</mosaic_0001>

<llo_original>
// kernel: tpu_custom_call.1
$region0: #{tpu_custom_call.1}
  #allocation0 [shape = 'u32[]', space=smem, size = 0x4, offset = 0x4, fixed_abs, tag = 'smem constant byte address 0x4 - core index']
  #allocation1 [shape = 'u32[72,128]{1,0:T(1,128)}', space=vmem, size = 0x9000, scoped, tag = 'internal scratch']
  #allocation2 [shape = 'f32[16,128]{1,0:T(8,128)}', space=vmem, size = 0x2000, scoped, tag = 'scratch operand']
  #allocation3 [shape = 'f32[1]{0:T(128)S(6)}', space=smem, size = 0x200, scoped, tag = 'scoped memory for tpu_custom_call.1']
  %s0 = inlined_call_operand.hbm [shape: f32[2,4,16], index: 0, kind: input, shape index: {}]
  %s1 = inlined_call_operand.hbm [shape: f32[9], index: 1, kind: input, shape index: {}]
  %s2 = inlined_call_operand.vmem [shape: f32[3,16,16], index: 2, kind: input, shape index: {}]
  %s3 = inlined_call_operand.vmem [shape: f32[3,16,1], index: 3, kind: input, shape index: {}]
  %s4 = inlined_call_operand.vmem [shape: f32[16,16], index: 4, kind: input, shape index: {}]
  %s5 = inlined_call_operand.vmem [shape: f32[16,1], index: 5, kind: input, shape index: {}]
  %s6 = inlined_call_operand.vmem [shape: f32[2,16], index: 6, kind: input, shape index: {}]
  %s7 = inlined_call_operand.<no memory space> [shape: f32[1], index: 7, kind: input, shape index: {}]
  %s8 = inlined_call_operand.hbm [shape: f32[1,2,128], index: 8, kind: output, shape index: {}]
  %s9 = sld [smem:[#allocation0]]
  $region50: #{tpu_custom_call.1} parent=0
    _
  %s11 = ssub.s32 1, %s9
  %s12 = scalar_select 0, %s11, %s9
  %13 = sst [smem:[#allocation3]] %s7
  $region1: #{tpu_custom_call.1} parent=0
    #allocation4 [shape = 'u8[4096]{0}', space=vmem, size = 0x1000, scoped, tag = 'input window, operand 0, single buffered']
    #allocation5 [shape = 's32[1]{0}', space=sflag, size = 0x4, scoped, tag = 'scoped memory for tpu_custom_call.1']
    #allocation6 [shape = 's32[1]{0}', space=sflag, size = 0x4, scoped, tag = 'scoped memory for tpu_custom_call.1']
    #allocation7 [shape = 's32[1]{0}', space=sflag, size = 0x4, scoped, tag = 'scoped memory for tpu_custom_call.1']
    #allocation8 [shape = 'u8[512]{0}', space=smem, size = 0x200, scoped, tag = 'input window, operand 1, single buffered']
    #allocation9 [shape = 'u8[1024]{0}', space=vmem, size = 0x400, scoped, tag = 'output window, operand 0, single buffered']
    %14 = vsyncpa [#allocation5], 0
    %15 = vsyncpa [#allocation7], 0
    %16 = vsyncpa [#allocation6], 0
    // Predicated region
    $region2: #{tpu_custom_call.1} parent=1 // pred_check
      _
    $region3: #{tpu_custom_call.1} parent=1 // pred_check_branch
      %18 = sbr.rel (0) target = $region5
    $region4: #{tpu_custom_call.1} parent=1 // pred_region
      %20 = vsyncadd [#allocation5], 0
      %s21 = sshll.u32 %s0, 4
      %s22 = int_to_ptr.hbm [resolvable:$true] %s21
      %s23 = sshll.u32 [#allocation4], 4
      %s24 = int_to_ptr.vmem [resolvable:$true] %s23
      %29 = dma.hbm_to_vmem [thread:$0]  %s22, 128, %s24, [#allocation5], 64, 64, 4
    $region5: #{tpu_custom_call.1} parent=1 // pred_fallthru
      _
    // Predicated region
    $region6: #{tpu_custom_call.1} parent=1 // pred_check
      _
    $region7: #{tpu_custom_call.1} parent=1 // pred_check_branch
      %31 = sbr.rel (0) target = $region9
    $region8: #{tpu_custom_call.1} parent=1 // pred_region
      %33 = vsyncadd [#allocation7], 0
      %s35 = sshll.u32 %s1, 4
      %s36 = int_to_ptr.hbm [resolvable:$true] %s35
      %38 = dma.hbm_to_smem %s36, 16, [#allocation8], [#allocation7]
    $region9: #{tpu_custom_call.1} parent=1 // pred_fallthru
      _
    // Predicated region
    $region10: #{tpu_custom_call.1} parent=1 // pred_check
      _
    $region11: #{tpu_custom_call.1} parent=1 // pred_check_branch
      %40 = sbr.rel (0) target = $region13
    $region12: #{tpu_custom_call.1} parent=1 // pred_region
      _
    $region13: #{tpu_custom_call.1} parent=1 // pred_fallthru
      _
    // Predicated region
    $region14: #{tpu_custom_call.1} parent=1 // pred_check
      _
    $region15: #{tpu_custom_call.1} parent=1 // pred_check_branch
      %42 = sbr.rel (0) target = $region17
    $region16: #{tpu_custom_call.1} parent=1 // pred_region
      _
    $region17: #{tpu_custom_call.1} parent=1 // pred_fallthru
      _
    // Predicated region
    $region18: #{tpu_custom_call.1} parent=1 // pred_check
      _
    $region19: #{tpu_custom_call.1} parent=1 // pred_check_branch
      %44 = sbr.rel (0) target = $region21
    $region20: #{tpu_custom_call.1} parent=1 // pred_region
      _
    $region21: #{tpu_custom_call.1} parent=1 // pred_fallthru
      _
    // Predicated region
    $region22: #{tpu_custom_call.1} parent=1 // pred_check
      _
    $region23: #{tpu_custom_call.1} parent=1 // pred_check_branch
      %46 = sbr.rel (0) target = $region25
    $region24: #{tpu_custom_call.1} parent=1 // pred_region
      _
    $region25: #{tpu_custom_call.1} parent=1 // pred_fallthru
      _
    // Predicated region
    $region26: #{tpu_custom_call.1} parent=1 // pred_check
      _
    $region27: #{tpu_custom_call.1} parent=1 // pred_check_branch
      %48 = sbr.rel (0) target = $region29
    $region28: #{tpu_custom_call.1} parent=1 // pred_region
      _
    $region29: #{tpu_custom_call.1} parent=1 // pred_fallthru
      _
    // Predicated region
    $region30: #{tpu_custom_call.1} parent=1 // pred_check
      _
    $region31: #{tpu_custom_call.1} parent=1 // pred_check_branch
      %50 = sbr.rel (0) target = $region33
    $region32: #{tpu_custom_call.1} parent=1 // pred_region
      _
    $region33: #{tpu_custom_call.1} parent=1 // pred_fallthru
      _
    // Predicated region
    $region34: #{tpu_custom_call.1} parent=1 // pred_check
      _
    $region35: #{tpu_custom_call.1} parent=1 // pred_check_branch
      %52 = sbr.rel (0) target = $region37
    $region36: #{tpu_custom_call.1} parent=1 // pred_region
      %54 = dma.done [#allocation5], 128
    $region37: #{tpu_custom_call.1} parent=1 // pred_fallthru
      _
    // Predicated region
    $region38: #{tpu_custom_call.1} parent=1 // pred_check
      _
    $region39: #{tpu_custom_call.1} parent=1 // pred_check_branch
      %56 = sbr.rel (0) target = $region41
    $region40: #{tpu_custom_call.1} parent=1 // pred_region
      %58 = dma.done [#allocation7], 16
    $region41: #{tpu_custom_call.1} parent=1 // pred_fallthru
      _
    %59 = sfence
    %60 = vst [vmem:[#allocation2] sm:$0xff] 0.0
    %61 = vst [vmem:[#allocation2 + $0x8] sm:$0xff] 0.0
    %v62 = vld [vmem:[#allocation4] sm:$0xf]
    %vm63 = vcmask 125952
    %64 = vst.msk [vmem:[#allocation2] sm:$0xf] %vm63, %v62
    %s65 = scalar_lea.vmem [#allocation4], 4
    %v66 = vld [vmem:[%s65] sm:$0xf]
    %67 = vst.msk [vmem:[#allocation2 + $0x8] sm:$0xf] %vm63, %v66
    %v68 = vld [vmem:[#allocation2] sm:$0xff]
    %v69 = vld [vmem:[#allocation2 + $0x8] sm:$0xff]
    %v70 = vlaneseq
    %v71 = vand.u32 %v70, 127
    %s72 = sld [smem:[#allocation8 + $0x2]]
    %v73 = vstv %s72
    %v74 = vmul.f32 %v73, %v68
    %v75 = vmul.f32 %v73, %v69
    %76 = vrot.lane.b32.xlu0 %v68, 2
    %v77 = vpop.permute.xlu0 %76
    %78 = vrot.lane.b32.xlu0 %v69, 2
    %v79 = vpop.permute.xlu0 %78
    %vm80 = vcmp.ge.s32.totalorder %v71, 2
    %v81 = vsel %vm80, %v77, 0.0
    %v82 = vsel %vm80, %v79, 0.0
    %s83 = sld [smem:[#allocation8]]
    %v84 = vstv %s83
    %v85 = vmul.f32 %v84, %v81
    %v86 = vmul.f32 %v84, %v82
    %v87 = vadd.f32 %v74, %v85
    %v88 = vadd.f32 %v75, %v86
    %89 = vrot.lane.b32.xlu0 %v68, 1
    %v90 = vpop.permute.xlu0 %89
    %91 = vrot.lane.b32.xlu0 %v69, 1
    %v92 = vpop.permute.xlu0 %91
    %vm93 = vcmp.ge.s32.totalorder %v71, 1
    %v94 = vsel %vm93, %v90, 0.0
    %v95 = vsel %vm93, %v92, 0.0
    %s96 = sld [smem:[#allocation8 + $0x1]]
    %v97 = vstv %s96
    %v98 = vmul.f32 %v97, %v94
    %v99 = vmul.f32 %v97, %v95
    %v100 = vadd.f32 %v87, %v98
    %v101 = vadd.f32 %v88, %v99
    %v102 = vld [vmem:[%s2] sm:$0xff]
    %v103 = vld [vmem:[%s2 + $0x8] sm:$0xff]
    %v104 = vld [vmem:[%s3] sm:$0xff]
    %v105 = vld [vmem:[%s3 + $0x8] sm:$0xff]
    %107 = vset.pattern.permute.xlu0 0
    %108 = vperm.xlu0 %107, %v104
    %v109 = vpop.permute.xlu0 %108
    %112 = vset.pattern.permute.xlu0 0
    %113 = vperm.xlu0 %112, %v105
    %v114 = vpop.permute.xlu0 %113
    %vm116 = vcmask 130048
    %v118 = vsel %vm116, %v102, 0
    %v121 = vsel %vm116, %v103, 0
    %123 = vmatpush.msra.mxu0 0.0
    %124 = vmatpush.msra.mxu0 0.0
    %125 = vmatpush.msra.mxu0 0.0
    %126 = vmatpush.msra.mxu0 0.0
    %127 = vmatpush.msra.mxu0 0.0
    %128 = vmatpush.msra.mxu0 0.0
    %129 = vmatpush.msra.mxu0 0.0
    %130 = vmatpush.msra.mxu0 0.0
    %131 = vmatpush.msra.mxu0 0.0
    %132 = vmatpush.msra.mxu0 0.0
    %133 = vmatpush.msra.mxu0 0.0
    %134 = vmatpush.msra.mxu0 0.0
    %135 = vmatpush.msra.mxu0 0.0
    %136 = vmatpush.msra.mxu0 0.0
    %137 = vmatpush.msra.mxu0 %v101
    %138 = vmatpush.msra.mxu0 %v100
    %139 = vmatmul.f32.gmra.mxu0 %v118
    %v140 = vpop.f32.mrf.mxu0
    %v141 = vadd.f32 %v109, %v140
    %142 = vmatmul.f32.gmra.mxu0 %v121
    %v143 = vpop.f32.mrf.mxu0
    %v144 = vadd.f32 %v114, %v143
    %145 = vdwg.mxu0
    %v146 = vmax.f32 %v141, 0.0
    %v147 = vmax.f32 %v144, 0.0
    %v148 = vld [vmem:[%s4] sm:$0xff]
    %v149 = vld [vmem:[%s4 + $0x8] sm:$0xff]
    %v150 = vld [vmem:[%s5] sm:$0xff]
    %v151 = vld [vmem:[%s5 + $0x8] sm:$0xff]
    %153 = vset.pattern.permute.xlu0 0
    %154 = vperm.xlu0 %153, %v150
    %v155 = vpop.permute.xlu0 %154
    %158 = vset.pattern.permute.xlu0 0
    %159 = vperm.xlu0 %158, %v151
    %v160 = vpop.permute.xlu0 %159
    %v163 = vsel %vm116, %v148, 0
    %v166 = vsel %vm116, %v149, 0
    %168 = vmatpush.msra.mxu0 0.0
    %169 = vmatpush.msra.mxu0 0.0
    %170 = vmatpush.msra.mxu0 0.0
    %171 = vmatpush.msra.mxu0 0.0
    %172 = vmatpush.msra.mxu0 0.0
    %173 = vmatpush.msra.mxu0 0.0
    %174 = vmatpush.msra.mxu0 0.0
    %175 = vmatpush.msra.mxu0 0.0
    %176 = vmatpush.msra.mxu0 0.0
    %177 = vmatpush.msra.mxu0 0.0
    %178 = vmatpush.msra.mxu0 0.0
    %179 = vmatpush.msra.mxu0 0.0
    %180 = vmatpush.msra.mxu0 0.0
    %181 = vmatpush.msra.mxu0 0.0
    %182 = vmatpush.msra.mxu0 %v69
    %183 = vmatpush.msra.mxu0 %v68
    %184 = vmatmul.f32.gmra.mxu0 %v163
    %v185 = vpop.f32.mrf.mxu0
    %v186 = vadd.f32 %v155, %v185
    %187 = vmatmul.f32.gmra.mxu0 %v166
    %v188 = vpop.f32.mrf.mxu0
    %v189 = vadd.f32 %v160, %v188
    %190 = vdwg.mxu0
    %v191 = vadd.f32 %v146, %v186
    %v192 = vadd.f32 %v147, %v189
    %v193 = vmax.f32 %v191, 0.0
    %v194 = vmax.f32 %v192, 0.0
    %s195 = sld [smem:[#allocation8 + $0x5]]
    %v196 = vstv %s195
    %v197 = vmul.f32 %v196, %v193
    %v198 = vmul.f32 %v196, %v194
    %199 = vrot.lane.b32.xlu0 %v193, 4
    %v200 = vpop.permute.xlu0 %199
    %201 = vrot.lane.b32.xlu0 %v194, 4
    %v202 = vpop.permute.xlu0 %201
    %vm203 = vcmp.ge.s32.totalorder %v71, 4
    %v204 = vsel %vm203, %v200, 0.0
    %v205 = vsel %vm203, %v202, 0.0
    %s206 = sld [smem:[#allocation8 + $0x3]]
    %v207 = vstv %s206
    %v208 = vmul.f32 %v207, %v204
    %v209 = vmul.f32 %v207, %v205
    %v210 = vadd.f32 %v197, %v208
    %v211 = vadd.f32 %v198, %v209
    %212 = vrot.lane.b32.xlu0 %v193, 2
    %v213 = vpop.permute.xlu0 %212
    %214 = vrot.lane.b32.xlu0 %v194, 2
    %v215 = vpop.permute.xlu0 %214
    %v216 = vsel %vm80, %v213, 0.0
    %v217 = vsel %vm80, %v215, 0.0
    %s218 = sld [smem:[#allocation8 + $0x4]]
    %v219 = vstv %s218
    %v220 = vmul.f32 %v219, %v216
    %v221 = vmul.f32 %v219, %v217
    %v222 = vadd.f32 %v210, %v220
    %v223 = vadd.f32 %v211, %v221
    %s224 = scalar_lea.vmem %s2, 16
    %v225 = vld [vmem:[%s224] sm:$0xff]
    %v226 = vld [vmem:[%s224 + $0x8] sm:$0xff]
    %s227 = scalar_lea.vmem %s3, 16
    %v228 = vld [vmem:[%s227] sm:$0xff]
    %v229 = vld [vmem:[%s227 + $0x8] sm:$0xff]
    %231 = vset.pattern.permute.xlu0 0
    %232 = vperm.xlu0 %231, %v228
    %v233 = vpop.permute.xlu0 %232
    %236 = vset.pattern.permute.xlu0 0
    %237 = vperm.xlu0 %236, %v229
    %v238 = vpop.permute.xlu0 %237
    %v241 = vsel %vm116, %v225, 0
    %v244 = vsel %vm116, %v226, 0
    %246 = vmatpush.msra.mxu0 0.0
    %247 = vmatpush.msra.mxu0 0.0
    %248 = vmatpush.msra.mxu0 0.0
    %249 = vmatpush.msra.mxu0 0.0
    %250 = vmatpush.msra.mxu0 0.0
    %251 = vmatpush.msra.mxu0 0.0
    %252 = vmatpush.msra.mxu0 0.0
    %253 = vmatpush.msra.mxu0 0.0
    %254 = vmatpush.msra.mxu0 0.0
    %255 = vmatpush.msra.mxu0 0.0
    %256 = vmatpush.msra.mxu0 0.0
    %257 = vmatpush.msra.mxu0 0.0
    %258 = vmatpush.msra.mxu0 0.0
    %259 = vmatpush.msra.mxu0 0.0
    %260 = vmatpush.msra.mxu0 %v223
    %261 = vmatpush.msra.mxu0 %v222
    %262 = vmatmul.f32.gmra.mxu0 %v241
    %v263 = vpop.f32.mrf.mxu0
    %v264 = vadd.f32 %v233, %v263
    %265 = vmatmul.f32.gmra.mxu0 %v244
    %v266 = vpop.f32.mrf.mxu0
    %v267 = vadd.f32 %v238, %v266
    %268 = vdwg.mxu0
    %v269 = vmax.f32 %v264, 0.0
    %v270 = vmax.f32 %v267, 0.0
    %v271 = vadd.f32 %v269, %v193
    %v272 = vadd.f32 %v270, %v194
    %v273 = vmax.f32 %v271, 0.0
    %v274 = vmax.f32 %v272, 0.0
    %s275 = sld [smem:[#allocation8 + $0x8]]
    %v276 = vstv %s275
    %v277 = vmul.f32 %v276, %v273
    %v278 = vmul.f32 %v276, %v274
    %279 = vrot.lane.b32.xlu0 %v273, 8
    %v280 = vpop.permute.xlu0 %279
    %281 = vrot.lane.b32.xlu0 %v274, 8
    %v282 = vpop.permute.xlu0 %281
    %vm283 = vcmp.ge.s32.totalorder %v71, 8
    %v284 = vsel %vm283, %v280, 0.0
    %v285 = vsel %vm283, %v282, 0.0
    %s286 = sld [smem:[#allocation8 + $0x6]]
    %v287 = vstv %s286
    %v288 = vmul.f32 %v287, %v284
    %v289 = vmul.f32 %v287, %v285
    %v290 = vadd.f32 %v277, %v288
    %v291 = vadd.f32 %v278, %v289
    %292 = vrot.lane.b32.xlu0 %v273, 4
    %v293 = vpop.permute.xlu0 %292
    %294 = vrot.lane.b32.xlu0 %v274, 4
    %v295 = vpop.permute.xlu0 %294
    %v296 = vsel %vm203, %v293, 0.0
    %v297 = vsel %vm203, %v295, 0.0
    %s298 = sld [smem:[#allocation8 + $0x7]]
    %v299 = vstv %s298
    %v300 = vmul.f32 %v299, %v296
    %v301 = vmul.f32 %v299, %v297
    %v302 = vadd.f32 %v290, %v300
    %v303 = vadd.f32 %v291, %v301
    %s304 = scalar_lea.vmem %s2, 32
    %v305 = vld [vmem:[%s304] sm:$0xff]
    %v306 = vld [vmem:[%s304 + $0x8] sm:$0xff]
    %s307 = scalar_lea.vmem %s3, 32
    %v308 = vld [vmem:[%s307] sm:$0xff]
    %v309 = vld [vmem:[%s307 + $0x8] sm:$0xff]
    %311 = vset.pattern.permute.xlu0 0
    %312 = vperm.xlu0 %311, %v308
    %v313 = vpop.permute.xlu0 %312
    %316 = vset.pattern.permute.xlu0 0
    %317 = vperm.xlu0 %316, %v309
    %v318 = vpop.permute.xlu0 %317
    %v321 = vsel %vm116, %v305, 0
    %v324 = vsel %vm116, %v306, 0
    %326 = vmatpush.msra.mxu0 0.0
    %327 = vmatpush.msra.mxu0 0.0
    %328 = vmatpush.msra.mxu0 0.0
    %329 = vmatpush.msra.mxu0 0.0
    %330 = vmatpush.msra.mxu0 0.0
    %331 = vmatpush.msra.mxu0 0.0
    %332 = vmatpush.msra.mxu0 0.0
    %333 = vmatpush.msra.mxu0 0.0
    %334 = vmatpush.msra.mxu0 0.0
    %335 = vmatpush.msra.mxu0 0.0
    %336 = vmatpush.msra.mxu0 0.0
    %337 = vmatpush.msra.mxu0 0.0
    %338 = vmatpush.msra.mxu0 0.0
    %339 = vmatpush.msra.mxu0 0.0
    %340 = vmatpush.msra.mxu0 %v303
    %341 = vmatpush.msra.mxu0 %v302
    %342 = vmatmul.f32.gmra.mxu0 %v321
    %v343 = vpop.f32.mrf.mxu0
    %v344 = vadd.f32 %v313, %v343
    %345 = vmatmul.f32.gmra.mxu0 %v324
    %v346 = vpop.f32.mrf.mxu0
    %v347 = vadd.f32 %v318, %v346
    %348 = vdwg.mxu0
    %v349 = vmax.f32 %v344, 0.0
    %v350 = vmax.f32 %v347, 0.0
    %v351 = vadd.f32 %v349, %v273
    %v352 = vadd.f32 %v350, %v274
    %v353 = vmax.f32 %v351, 0.0
    %v354 = vmax.f32 %v352, 0.0
    %v355 = vld [vmem:[%s6] sm:$0x3]
    %s356 = sld [smem:[#allocation3]]
    %v357 = vstv %s356
    %v359 = vsel %vm116, %v355, 0
    %361 = vmatpush.msra.mxu0 0.0
    %362 = vmatpush.msra.mxu0 0.0
    %363 = vmatpush.msra.mxu0 0.0
    %364 = vmatpush.msra.mxu0 0.0
    %365 = vmatpush.msra.mxu0 0.0
    %366 = vmatpush.msra.mxu0 0.0
    %367 = vmatpush.msra.mxu0 0.0
    %368 = vmatpush.msra.mxu0 0.0
    %369 = vmatpush.msra.mxu0 0.0
    %370 = vmatpush.msra.mxu0 0.0
    %371 = vmatpush.msra.mxu0 0.0
    %372 = vmatpush.msra.mxu0 0.0
    %373 = vmatpush.msra.mxu0 0.0
    %374 = vmatpush.msra.mxu0 0.0
    %375 = vmatpush.msra.mxu0 %v354
    %376 = vmatpush.msra.mxu0 %v353
    %377 = vmatmul.f32.gmra.mxu0 %v359
    %v378 = vpop.f32.mrf.mxu0
    %v379 = vadd.f32 %v357, %v378
    %380 = vdwg.mxu0
    %381 = vst [vmem:[#allocation9] sm:$0x3] %v379
    // Predicated region
    $region42: #{tpu_custom_call.1} parent=1 // pred_check
      _
    $region43: #{tpu_custom_call.1} parent=1 // pred_check_branch
      %383 = sbr.rel (0) target = $region45
    $region44: #{tpu_custom_call.1} parent=1 // pred_region
      %385 = vsyncadd [#allocation6], 0
      %s387 = sshll.u32 [#allocation9], 4
      %s388 = int_to_ptr.vmem [resolvable:$true] %s387
      %s389 = sshll.u32 %s8, 4
      %s390 = int_to_ptr.hbm [resolvable:$true] %s389
      %392 = dma.vmem_to_hbm [thread:$0]  %s388, 32, %s390, [#allocation6]
    $region45: #{tpu_custom_call.1} parent=1 // pred_fallthru
      _
    // Predicated region
    $region46: #{tpu_custom_call.1} parent=1 // pred_check
      _
    $region47: #{tpu_custom_call.1} parent=1 // pred_check_branch
      %394 = sbr.rel (0) target = $region49
    $region48: #{tpu_custom_call.1} parent=1 // pred_region
      %396 = dma.done [#allocation6], 32
    $region49: #{tpu_custom_call.1} parent=1 // pred_fallthru
      _
    %397 = vsyncpa [#allocation5], 1
    %398 = vsyncpa [#allocation6], 1
    %399 = vsyncpa [#allocation7], 1

</llo_original>
